<compile_context>
chip_gen: v7x
topology: tpu7x:2x2x1
jax: 0.10.0
libtpu: 0.0.40
codegen_flags: <defaults>
</compile_context>

<pallas_src>
import jax
import jax.numpy as jnp
from jax.experimental import pallas as pl
from jax.experimental.pallas import tpu as pltpu

IN_DIM = 90
HID_DIM = int(90 * (2 / 3) // 1) + 7   # = 67
OUT_DIM = 7


def _round_up(n, m):
    return ((n + m - 1) // m) * m


def _cdiv(a, b):
    return -(-a // b)


def mlp_softmax_kernel(x_ref, w1_ref, b1_ref, w2_ref, b2_ref, o_ref):
    # --- Linear 1 (MXU, f32 accumulation) ---
    x = x_ref[...]
    h = jnp.dot(x, w1_ref[...], preferred_element_type=jnp.float32) + b1_ref[...]
    # --- ReLU (VPU) ---
    h = jnp.maximum(h, 0.0)
    # --- Linear 2 (MXU) ---
    logits = jnp.dot(h, w2_ref[...], preferred_element_type=jnp.float32) + b2_ref[...]
    # --- Softmax over last axis (torch dim=1), max-subtracted, f32 ---
    m = jnp.max(logits, axis=-1, keepdims=True)
    e = jnp.exp(logits - m)
    denom = jnp.sum(e, axis=-1, keepdims=True)
    # Exact divide (NOT pl.reciprocal(approx=True)): the approximation broke
    # row-sum==1 at 1e-3, and this kernel is memory-bound so the EUP slot win
    # was worthless.
    # TODO(synk): if a profile ever shows store-side cost from the lane-sparse
    # (tile_b, 7) output, present a lane-dense output slab instead of padding
    # the HBM output to 128 columns.
    o_ref[...] = (e / denom).astype(o_ref.dtype)


def neural_net_forward(x, w1, b1, w2, b2, *,
                       tb=2048,
                       core_parallel=False,        # set True on v7x (2 TCs/chip)
                       x_buffer_count=2,           # 3 => deeper x pipeline
                       vmem_limit_bytes=32 * 1024 * 1024):
    """x: (B, 90) f32; w1: (90, 67); b1: (1, 67); w2: (67, 7); b2: (1, 7)."""
    B = x.shape[0]

    # --- Batch tiling with bounded padding ------------------------------
    # Aim for ~tb rows per grid step (so per-step HBM time dominates the
    # ~0.35 us fixed step overhead), but split B into equal-ish tiles so the
    # padded tail is at most ~8 rows per tile instead of up to a full tile.
    tb_cap = max(8, min(tb, _round_up(B, 8)))
    n_tiles = _cdiv(B, tb_cap)
    tile_b = _round_up(_cdiv(B, n_tiles), 8)
    b_pad = n_tiles * tile_b
    if b_pad != B:
        x = jnp.pad(x, ((0, b_pad - B), (0, 0)))
    grid = (n_tiles,)

    # VMEM budget at tile_b=2048 (f32, lane-padded to 128):
    #   x double buffer ~2 MiB, out double buffer ~2 MiB, h/logits/e temps
    #   ~3 MiB, weights ~0.03 MiB  => well under v5e's 16 MiB scoped default
    #   and v7x's 64 MiB physical VMEM.
    weight_bytes = (IN_DIM * HID_DIM + HID_DIM + HID_DIM * OUT_DIM + OUT_DIM) * 4
    cost = pl.CostEstimate(
        flops=2 * b_pad * (IN_DIM * HID_DIM + HID_DIM * OUT_DIM),
        transcendentals=b_pad * OUT_DIM,                      # exp
        bytes_accessed=b_pad * (IN_DIM + OUT_DIM) * 4 + weight_bytes,
    )

    # x streams per batch tile; weights/biases stay VMEM-resident (constant
    # index_map).  Optionally deepen the x pipeline (review item).
    x_spec_kwargs = {}
    if x_buffer_count != 2:
        x_spec_kwargs["pipeline_mode"] = pl.Buffered(x_buffer_count)
    x_spec = pl.BlockSpec((tile_b, IN_DIM), lambda i: (i, 0), **x_spec_kwargs)

    # v7x: CORE_PARALLEL shards the batch-tile grid across its 2 TensorCores.
    # Plain "parallel" is the safe default on single-TC chips (v5e/v6e).
    dim_sem = (pltpu.CORE_PARALLEL,) if core_parallel else ("parallel",)

    out = pl.pallas_call(
        mlp_softmax_kernel,
        out_shape=jax.ShapeDtypeStruct((b_pad, OUT_DIM), jnp.float32),
        grid_spec=pl.GridSpec(
            grid=grid,
            in_specs=[
                x_spec,
                pl.BlockSpec((IN_DIM, HID_DIM), lambda i: (0, 0)),
                pl.BlockSpec((1, HID_DIM), lambda i: (0, 0)),
                pl.BlockSpec((HID_DIM, OUT_DIM), lambda i: (0, 0)),
                pl.BlockSpec((1, OUT_DIM), lambda i: (0, 0)),
            ],
            out_specs=pl.BlockSpec((tile_b, OUT_DIM), lambda i: (i, 0)),
        ),
        compiler_params=pltpu.CompilerParams(
            dimension_semantics=dim_sem,
            vmem_limit_bytes=vmem_limit_bytes,
        ),
        cost_estimate=cost,
    )(x, w1, b1, w2, b2)
    return out[:B]


def init_params(key):
    """Deterministic init matching PyTorch Linear's default shapes
    (Kaiming-uniform-style bounds; exact values don't matter, determinism does)."""
    k1, k2, k3, k4 = jax.random.split(key, 4)
    bound1 = 1.0 / jnp.sqrt(IN_DIM)
    bound2 = 1.0 / jnp.sqrt(HID_DIM)
    # Stored transposed relative to torch (out, in) -> (in, out) for x @ W.
    w1 = jax.random.uniform(k1, (IN_DIM, HID_DIM), jnp.float32, -bound1, bound1)
    b1 = jax.random.uniform(k2, (1, HID_DIM), jnp.float32, -bound1, bound1)
    w2 = jax.random.uniform(k3, (HID_DIM, OUT_DIM), jnp.float32, -bound2, bound2)
    b2 = jax.random.uniform(k4, (1, OUT_DIM), jnp.float32, -bound2, bound2)
    return w1, b1, w2, b2


def _reference(x, w1, b1, w2, b2):
    h = jnp.maximum(x @ w1 + b1, 0.0)
    return jax.nn.softmax(h @ w2 + b2, axis=1)


if __name__ == "__main__":
    key = jax.random.PRNGKey(0)
    kx, kx2, kp = jax.random.split(key, 3)
    w1, b1, w2, b2 = init_params(kp)

    # Primary test: small batch.
    batch = 8
    x = jax.random.normal(kx, (batch, IN_DIM), dtype=jnp.float32)
    out = jax.block_until_ready(neural_net_forward(x, w1, b1, w2, b2))
    ref = _reference(x, w1, b1, w2, b2)
    assert out.shape == (batch, OUT_DIM)
    assert jnp.allclose(out, ref, atol=1e-3, rtol=1e-3)
    assert jnp.allclose(jnp.sum(out, axis=1), 1.0, atol=1e-4)

    # Secondary test: multi-tile grid + bounded padding (B not a multiple of
    # the tile).  Small tb keeps this cheap while exercising the tiling path.
    batch2 = 1030
    x2 = jax.random.normal(kx2, (batch2, IN_DIM), dtype=jnp.float32)
    out2 = jax.block_until_ready(neural_net_forward(x2, w1, b1, w2, b2, tb=256))
    ref2 = _reference(x2, w1, b1, w2, b2)
    assert out2.shape == (batch2, OUT_DIM)
    assert jnp.allclose(out2, ref2, atol=1e-3, rtol=1e-3)
    assert jnp.allclose(jnp.sum(out2, axis=1), 1.0, atol=1e-4)

    print("KERNEL_OK")
</pallas_src>

<mosaic_0001>
module attributes {stable_mosaic.version = 11 : i64} {
  func.func @mlp_softmax_kernel(%arg0: i32, %arg1: memref<8x90xf32, #tpu.memory_space<vmem>>, %arg2: memref<90x67xf32, #tpu.memory_space<vmem>>, %arg3: memref<1x67xf32, #tpu.memory_space<vmem>>, %arg4: memref<67x7xf32, #tpu.memory_space<vmem>>, %arg5: memref<1x7xf32, #tpu.memory_space<vmem>>, %arg6: memref<8x7xf32, #tpu.memory_space<vmem>>) attributes {dimension_semantics = [#tpu.dimension_semantics<parallel>], iteration_bounds = array<i64: 1>, scalar_prefetch = 0 : i64, scratch_operands = 0 : i64, tpu.core_type = #tpu.core_type<tc>, window_params = [{transform_indices = @transform_0, window_bounds = array<i64: 8, 90>}, {pipeline_mode = #tpu.pipeline_mode<synchronous>, transform_indices = @transform_1, window_bounds = array<i64: 90, 67>}, {pipeline_mode = #tpu.pipeline_mode<synchronous>, transform_indices = @transform_2, window_bounds = array<i64: 1, 67>}, {pipeline_mode = #tpu.pipeline_mode<synchronous>, transform_indices = @transform_3, window_bounds = array<i64: 67, 7>}, {pipeline_mode = #tpu.pipeline_mode<synchronous>, transform_indices = @transform_4, window_bounds = array<i64: 1, 7>}, {transform_indices = @transform_5, window_bounds = array<i64: 8, 7>}]} {
    %c0 = arith.constant 0 : index
    %c0_0 = arith.constant 0 : index
    %0 = vector.load %arg1[%c0, %c0_0] : memref<8x90xf32, #tpu.memory_space<vmem>>, vector<8x90xf32>
    %c0_1 = arith.constant 0 : index
    %c0_2 = arith.constant 0 : index
    %1 = vector.load %arg2[%c0_1, %c0_2] : memref<90x67xf32, #tpu.memory_space<vmem>>, vector<90x67xf32>
    %cst = arith.constant dense<0.000000e+00> : vector<8x67xf32>
    %2 = tpu.matmul %0, %1, %cst {dimension_numbers = #tpu.dot_dimension_numbers<[1], [0], [0], [1], [0, 0, 1, 1], [], []>} : vector<8x90xf32>, vector<90x67xf32>, vector<8x67xf32> -> vector<8x67xf32>
    %c0_3 = arith.constant 0 : index
    %c0_4 = arith.constant 0 : index
    %3 = vector.load %arg3[%c0_3, %c0_4] : memref<1x67xf32, #tpu.memory_space<vmem>>, vector<1x67xf32>
    %4 = vector.broadcast %3 : vector<1x67xf32> to vector<8x67xf32>
    %5 = arith.addf %2, %4 : vector<8x67xf32>
    %cst_5 = arith.constant 0.000000e+00 : f32
    %6 = vector.broadcast %cst_5 : f32 to vector<8x67xf32>
    %7 = arith.maximumf %5, %6 : vector<8x67xf32>
    %c0_6 = arith.constant 0 : index
    %c0_7 = arith.constant 0 : index
    %8 = vector.load %arg4[%c0_6, %c0_7] : memref<67x7xf32, #tpu.memory_space<vmem>>, vector<67x7xf32>
    %cst_8 = arith.constant dense<0.000000e+00> : vector<8x7xf32>
    %9 = tpu.matmul %7, %8, %cst_8 {dimension_numbers = #tpu.dot_dimension_numbers<[1], [0], [0], [1], [0, 0, 1, 1], [], []>} : vector<8x67xf32>, vector<67x7xf32>, vector<8x7xf32> -> vector<8x7xf32>
    %c0_9 = arith.constant 0 : index
    %c0_10 = arith.constant 0 : index
    %10 = vector.load %arg5[%c0_9, %c0_10] : memref<1x7xf32, #tpu.memory_space<vmem>>, vector<1x7xf32>
    %11 = vector.broadcast %10 : vector<1x7xf32> to vector<8x7xf32>
    %12 = arith.addf %9, %11 : vector<8x7xf32>
    %cst_11 = arith.constant dense<0xFF800000> : vector<8xf32>
    %13 = vector.multi_reduction <maximumf>, %12, %cst_11 [1] : vector<8x7xf32> to vector<8xf32>
    %14 = vector.shape_cast %13 : vector<8xf32> to vector<8x1xf32>
    %15 = vector.broadcast %14 : vector<8x1xf32> to vector<8x7xf32>
    %16 = arith.subf %12, %15 : vector<8x7xf32>
    %17 = math.exp %16 : vector<8x7xf32>
    %cst_12 = arith.constant dense<0.000000e+00> : vector<8xf32>
    %18 = vector.multi_reduction <add>, %17, %cst_12 [1] : vector<8x7xf32> to vector<8xf32>
    %19 = vector.shape_cast %18 : vector<8xf32> to vector<8x1xf32>
    %20 = vector.broadcast %19 : vector<8x1xf32> to vector<8x7xf32>
    %21 = arith.divf %17, %20 : vector<8x7xf32>
    %c0_13 = arith.constant 0 : index
    %c0_14 = arith.constant 0 : index
    %22 = vector.load %arg6[%c0_13, %c0_14] : memref<8x7xf32, #tpu.memory_space<vmem>>, vector<8x7xf32>
    tpu.vector_store %arg6[%c0_13, %c0_14], %21 {strides = array<i32>} : memref<8x7xf32, #tpu.memory_space<vmem>>, vector<8x7xf32>,
    return
  }
  func.func @transform_0(%arg0: i32) -> (i32, i32) {
    %c0_i32 = arith.constant 0 : i32
    %c0_i32_0 = arith.constant 0 : i32
    return %arg0, %c0_i32 : i32, i32
  }
  func.func @transform_1(%arg0: i32) -> (i32, i32) {
    %c0_i32 = arith.constant 0 : i32
    %c0_i32_0 = arith.constant 0 : i32
    %c0_i32_1 = arith.constant 0 : i32
    return %c0_i32, %c0_i32_0 : i32, i32
  }
  func.func @transform_2(%arg0: i32) -> (i32, i32) {
    %c0_i32 = arith.constant 0 : i32
    %c0_i32_0 = arith.constant 0 : i32
    %c0_i32_1 = arith.constant 0 : i32
    return %c0_i32, %c0_i32_0 : i32, i32
  }
  func.func @transform_3(%arg0: i32) -> (i32, i32) {
    %c0_i32 = arith.constant 0 : i32
    %c0_i32_0 = arith.constant 0 : i32
    %c0_i32_1 = arith.constant 0 : i32
    return %c0_i32, %c0_i32_0 : i32, i32
  }
  func.func @transform_4(%arg0: i32) -> (i32, i32) {
    %c0_i32 = arith.constant 0 : i32
    %c0_i32_0 = arith.constant 0 : i32
    %c0_i32_1 = arith.constant 0 : i32
    return %c0_i32, %c0_i32_0 : i32, i32
  }
  func.func @transform_5(%arg0: i32) -> (i32, i32) {
    %c0_i32 = arith.constant 0 : i32
    %c0_i32_0 = arith.constant 0 : i32
    return %arg0, %c0_i32 : i32, i32
  }
}

</mosaic_0001>

<llo_original>
// kernel: tpu_custom_call.1
$region0: #{tpu_custom_call.1}
  #allocation0 [shape = 'u32[]', space=smem, size = 0x4, offset = 0x4, fixed_abs, tag = 'smem constant byte address 0x4 - core index']
  #allocation1 [shape = 'u32[144,128]{1,0:T(1,128)}', space=vmem, size = 0x12000, scoped, tag = 'internal scratch']
  %s0 = inlined_call_operand.vmem [shape: f32[8,90], index: 0, kind: input, shape index: {}]
  %s1 = inlined_call_operand.vmem [shape: f32[90,67], index: 1, kind: input, shape index: {}]
  %s2 = inlined_call_operand.vmem [shape: f32[1,67], index: 2, kind: input, shape index: {}]
  %s3 = inlined_call_operand.vmem [shape: f32[67,7], index: 3, kind: input, shape index: {}]
  %s4 = inlined_call_operand.vmem [shape: f32[1,7], index: 4, kind: input, shape index: {}]
  %s5 = inlined_call_operand.hbm [shape: f32[8,7], index: 5, kind: output, shape index: {}]
  %s6 = sld [smem:[#allocation0]]
  $region30: #{tpu_custom_call.1} parent=0
    _
  %s8 = ssub.s32 1, %s6
  %s9 = scalar_select 0, %s8, %s6
  $region1: #{tpu_custom_call.1} parent=0
    #allocation2 [shape = 'u8[4096]{0}', space=vmem, size = 0x1000, scoped, tag = 'output window, operand 0, single buffered']
    #allocation3 [shape = 's32[1]{0}', space=sflag, size = 0x4, scoped, tag = 'scoped memory for tpu_custom_call.1']
    %10 = vsyncpa [#allocation3], 0
    // Predicated region
    $region2: #{tpu_custom_call.1} parent=1 // pred_check
      _
    $region3: #{tpu_custom_call.1} parent=1 // pred_check_branch
      %12 = sbr.rel (0) target = $region5
    $region4: #{tpu_custom_call.1} parent=1 // pred_region
      _
    $region5: #{tpu_custom_call.1} parent=1 // pred_fallthru
      _
    // Predicated region
    $region6: #{tpu_custom_call.1} parent=1 // pred_check
      _
    $region7: #{tpu_custom_call.1} parent=1 // pred_check_branch
      %14 = sbr.rel (0) target = $region9
    $region8: #{tpu_custom_call.1} parent=1 // pred_region
      _
    $region9: #{tpu_custom_call.1} parent=1 // pred_fallthru
      _
    // Predicated region
    $region10: #{tpu_custom_call.1} parent=1 // pred_check
      _
    $region11: #{tpu_custom_call.1} parent=1 // pred_check_branch
      %16 = sbr.rel (0) target = $region13
    $region12: #{tpu_custom_call.1} parent=1 // pred_region
      _
    $region13: #{tpu_custom_call.1} parent=1 // pred_fallthru
      _
    // Predicated region
    $region14: #{tpu_custom_call.1} parent=1 // pred_check
      _
    $region15: #{tpu_custom_call.1} parent=1 // pred_check_branch
      %18 = sbr.rel (0) target = $region17
    $region16: #{tpu_custom_call.1} parent=1 // pred_region
      _
    $region17: #{tpu_custom_call.1} parent=1 // pred_fallthru
      _
    // Predicated region
    $region18: #{tpu_custom_call.1} parent=1 // pred_check
      _
    $region19: #{tpu_custom_call.1} parent=1 // pred_check_branch
      %20 = sbr.rel (0) target = $region21
    $region20: #{tpu_custom_call.1} parent=1 // pred_region
      _
    $region21: #{tpu_custom_call.1} parent=1 // pred_fallthru
      _
    %v21 = vld [vmem:[%s0] sm:$0xff]
    %v22 = vld [vmem:[%s1] sm:$0xff]
    %v23 = vld [vmem:[%s1 + $0x8] sm:$0xff]
    %v24 = vld [vmem:[%s1 + $0x10] sm:$0xff]
    %v25 = vld [vmem:[%s1 + $0x18] sm:$0xff]
    %v26 = vld [vmem:[%s1 + $0x20] sm:$0xff]
    %v27 = vld [vmem:[%s1 + $0x28] sm:$0xff]
    %v28 = vld [vmem:[%s1 + $0x30] sm:$0xff]
    %v29 = vld [vmem:[%s1 + $0x38] sm:$0xff]
    %v30 = vld [vmem:[%s1 + $0x40] sm:$0xff]
    %v31 = vld [vmem:[%s1 + $0x48] sm:$0xff]
    %v32 = vld [vmem:[%s1 + $0x50] sm:$0xff]
    %v33 = vld [vmem:[%s1 + $0x58] sm:$0x3]
    %v34 = vld [vmem:[%s2] sm:$0x1]
    %v36 = vlaneseq
    %v37 = vshrl.u32 %v36, 7
    %v38 = vsub.s32 0, %v37
    %v39 = vrot.slane %v34, %v38
    %vm41 = vcmask 736256
    %v43 = vsel %vm41, %v21, 0
    %vm45 = vcmask 1041408
    %v47 = vsel %vm45, %v33, 0
    %49 = vmatprep.subr.mxu0 0.0
    %50 = vmatpush1.msra.mxu0 %v22
    %51 = vmatprep.subr.mxu0 0.0
    %52 = vmatpush1.msra.mxu0 %v23
    %53 = vmatprep.subr.mxu0 0.0
    %54 = vmatpush1.msra.mxu0 %v24
    %55 = vmatprep.subr.mxu0 0.0
    %56 = vmatpush1.msra.mxu0 %v25
    %57 = vmatprep.subr.mxu0 0.0
    %58 = vmatpush1.msra.mxu0 %v26
    %59 = vmatprep.subr.mxu0 0.0
    %60 = vmatpush1.msra.mxu0 %v27
    %61 = vmatprep.subr.mxu0 0.0
    %62 = vmatpush1.msra.mxu0 %v28
    %63 = vmatprep.subr.mxu0 0.0
    %64 = vmatpush1.msra.mxu0 %v29
    %65 = vmatprep.subr.mxu0 0.0
    %66 = vmatpush1.msra.mxu0 %v30
    %67 = vmatprep.subr.mxu0 0.0
    %68 = vmatpush1.msra.mxu0 %v31
    %69 = vmatprep.subr.mxu0 0.0
    %70 = vmatpush1.msra.mxu0 %v32
    %71 = vmatprep.subr.mxu0 0.0
    %72 = vmatpush1.msra.mxu0 %v47
    %73 = vmatprep.subr.mxu0 0.0
    %74 = vmatpush1.msra.mxu0 0.0
    %75 = vmatprep.subr.mxu0 0.0
    %76 = vmatpush1.msra.mxu0 0.0
    %77 = vmatprep.subr.mxu0 0.0
    %78 = vmatpush1.msra.mxu0 0.0
    %79 = vmatprep.subr.mxu0 0.0
    %80 = vmatpush1.msra.mxu0 0.0
    %81 = vmatprep.subr.mxu0 0.0
    %82 = vmatpush1.msra.mxu0 0.0
    %83 = vmatprep.subr.mxu0 0.0
    %84 = vmatpush1.msra.mxu0 0.0
    %85 = vmatprep.subr.mxu0 0.0
    %86 = vmatpush1.msra.mxu0 0.0
    %87 = vmatprep.subr.mxu0 0.0
    %88 = vmatpush1.msra.mxu0 0.0
    %89 = vmatprep.subr.mxu0 0.0
    %90 = vmatpush1.msra.mxu0 0.0
    %91 = vmatprep.subr.mxu0 0.0
    %92 = vmatpush1.msra.mxu0 0.0
    %93 = vmatprep.subr.mxu0 0.0
    %94 = vmatpush1.msra.mxu0 0.0
    %95 = vmatprep.subr.mxu0 0.0
    %96 = vmatpush1.msra.mxu0 0.0
    %97 = vmatprep.subr.mxu0 0.0
    %98 = vmatpush1.msra.mxu0 0.0
    %99 = vmatprep.subr.mxu0 0.0
    %100 = vmatpush1.msra.mxu0 0.0
    %101 = vmatprep.subr.mxu0 0.0
    %102 = vmatpush1.msra.mxu0 0.0
    %103 = vmatprep.subr.mxu0 0.0
    %104 = vmatpush1.msra.mxu0 0.0
    %105 = vmatprep.subr.mxu0 0.0
    %106 = vmatpush1.msra.mxu0 0.0
    %107 = vmatprep.subr.mxu0 0.0
    %108 = vmatpush1.msra.mxu0 0.0
    %109 = vmatprep.subr.mxu0 0.0
    %110 = vmatpush1.msra.mxu0 0.0
    %111 = vmatprep.subr.mxu0 0.0
    %112 = vmatpush1.msra.mxu0 0.0
    %113 = vmatprep.mubr.f32.mxu0 0.0
    %114 = vmatmul.mubr.f32.gmra.mrb[0].mxu0 %v43
    %v115 = vpop.f32.mrb[0].mxu0
    %v116 = vadd.f32 %v39, %v115
    %v117 = vpop.f32.mrb[0].mxu0
    %118 = vdwg.mxu0
    %v119 = vmax.f32 %v116, 0.0
    %v120 = vld [vmem:[%s3] sm:$0xff]
    %v121 = vld [vmem:[%s3 + $0x8] sm:$0xff]
    %v122 = vld [vmem:[%s3 + $0x10] sm:$0xff]
    %v123 = vld [vmem:[%s3 + $0x18] sm:$0xff]
    %v124 = vld [vmem:[%s3 + $0x20] sm:$0xff]
    %v125 = vld [vmem:[%s3 + $0x28] sm:$0xff]
    %v126 = vld [vmem:[%s3 + $0x30] sm:$0xff]
    %v127 = vld [vmem:[%s3 + $0x38] sm:$0xff]
    %v128 = vld [vmem:[%s3 + $0x40] sm:$0x7]
    %v129 = vld [vmem:[%s4] sm:$0x1]
    %v131 = vlaneseq
    %v132 = vshrl.u32 %v131, 7
    %v133 = vsub.s32 0, %v132
    %v134 = vrot.slane %v129, %v133
    %vm136 = vcmask 547840
    %v138 = vsel %vm136, %v119, 0
    %vm140 = vcmask 1042432
    %v142 = vsel %vm140, %v128, 0
    %144 = vmatprep.subr.mxu0 0.0
    %145 = vmatpush1.msra.mxu0 %v120
    %146 = vmatprep.subr.mxu0 0.0
    %147 = vmatpush1.msra.mxu0 %v121
    %148 = vmatprep.subr.mxu0 0.0
    %149 = vmatpush1.msra.mxu0 %v122
    %150 = vmatprep.subr.mxu0 0.0
    %151 = vmatpush1.msra.mxu0 %v123
    %152 = vmatprep.subr.mxu0 0.0
    %153 = vmatpush1.msra.mxu0 %v124
    %154 = vmatprep.subr.mxu0 0.0
    %155 = vmatpush1.msra.mxu0 %v125
    %156 = vmatprep.subr.mxu0 0.0
    %157 = vmatpush1.msra.mxu0 %v126
    %158 = vmatprep.subr.mxu0 0.0
    %159 = vmatpush1.msra.mxu0 %v127
    %160 = vmatprep.subr.mxu0 0.0
    %161 = vmatpush1.msra.mxu0 %v142
    %162 = vmatprep.subr.mxu0 0.0
    %163 = vmatpush1.msra.mxu0 0.0
    %164 = vmatprep.subr.mxu0 0.0
    %165 = vmatpush1.msra.mxu0 0.0
    %166 = vmatprep.subr.mxu0 0.0
    %167 = vmatpush1.msra.mxu0 0.0
    %168 = vmatprep.subr.mxu0 0.0
    %169 = vmatpush1.msra.mxu0 0.0
    %170 = vmatprep.subr.mxu0 0.0
    %171 = vmatpush1.msra.mxu0 0.0
    %172 = vmatprep.subr.mxu0 0.0
    %173 = vmatpush1.msra.mxu0 0.0
    %174 = vmatprep.subr.mxu0 0.0
    %175 = vmatpush1.msra.mxu0 0.0
    %176 = vmatprep.subr.mxu0 0.0
    %177 = vmatpush1.msra.mxu0 0.0
    %178 = vmatprep.subr.mxu0 0.0
    %179 = vmatpush1.msra.mxu0 0.0
    %180 = vmatprep.subr.mxu0 0.0
    %181 = vmatpush1.msra.mxu0 0.0
    %182 = vmatprep.subr.mxu0 0.0
    %183 = vmatpush1.msra.mxu0 0.0
    %184 = vmatprep.subr.mxu0 0.0
    %185 = vmatpush1.msra.mxu0 0.0
    %186 = vmatprep.subr.mxu0 0.0
    %187 = vmatpush1.msra.mxu0 0.0
    %188 = vmatprep.subr.mxu0 0.0
    %189 = vmatpush1.msra.mxu0 0.0
    %190 = vmatprep.subr.mxu0 0.0
    %191 = vmatpush1.msra.mxu0 0.0
    %192 = vmatprep.subr.mxu0 0.0
    %193 = vmatpush1.msra.mxu0 0.0
    %194 = vmatprep.subr.mxu0 0.0
    %195 = vmatpush1.msra.mxu0 0.0
    %196 = vmatprep.subr.mxu0 0.0
    %197 = vmatpush1.msra.mxu0 0.0
    %198 = vmatprep.subr.mxu0 0.0
    %199 = vmatpush1.msra.mxu0 0.0
    %200 = vmatprep.subr.mxu0 0.0
    %201 = vmatpush1.msra.mxu0 0.0
    %202 = vmatprep.subr.mxu0 0.0
    %203 = vmatpush1.msra.mxu0 0.0
    %204 = vmatprep.subr.mxu0 0.0
    %205 = vmatpush1.msra.mxu0 0.0
    %206 = vmatprep.subr.mxu0 0.0
    %207 = vmatpush1.msra.mxu0 0.0
    %208 = vmatprep.mubr.f32.mxu0 0.0
    %209 = vmatmul.mubr.f32.gmra.mrb[0].mxu0 %v138
    %v210 = vpop.f32.mrb[0].mxu0
    %v211 = vadd.f32 %v134, %v210
    %v212 = vpop.f32.mrb[0].mxu0
    %213 = vdwg.mxu0
    %vm214 = vcmask 56320
    %v215 = vsel %vm214, %v211, -inf
    %216 = vmax.xlane.f32.xlu0 %v215
    %v217 = vpop.xlane.xlu0 %216
    %v218 = vsub.f32 %v211, %v217
    %v219 = vmul.f32 %v218, 1.442695
    %v220 = vpow.pop %v219
    %v221 = vsel %vm214, %v220, 0.0
    %222 = vadd.xlane.f32.xlu0 %v221
    %v223 = vpop.xlane.xlu0 %222
    %v224 = vrcp.pop %v223
    %v225 = vmul.f32 %v220, %v224
    %226 = vst.msk [vmem:[#allocation2] sm:$0xff] %vm214, %v225
    // Predicated region
    $region22: #{tpu_custom_call.1} parent=1 // pred_check
      _
    $region23: #{tpu_custom_call.1} parent=1 // pred_check_branch
      %228 = sbr.rel (0) target = $region25
    $region24: #{tpu_custom_call.1} parent=1 // pred_region
      %s230 = ssub.s32 128, 128
      %231 = vsyncadd [#allocation3], %s230
      %s233 = sshll.u32 [#allocation2], 4
      %s234 = int_to_ptr.vmem [resolvable:$true] %s233
      %236 = dma.vmem_to_hbm [thread:$0]  %s234, 128, %s5, [#allocation3]
    $region25: #{tpu_custom_call.1} parent=1 // pred_fallthru
      _
    // Predicated region
    $region26: #{tpu_custom_call.1} parent=1 // pred_check
      _
    $region27: #{tpu_custom_call.1} parent=1 // pred_check_branch
      %238 = sbr.rel (0) target = $region29
    $region28: #{tpu_custom_call.1} parent=1 // pred_region
      %239 = dma.done [#allocation3], 128
    $region29: #{tpu_custom_call.1} parent=1 // pred_fallthru
      _
    %240 = vsyncpa [#allocation3], 1

</llo_original>
